<compile_context>
chip_gen: v5e
topology: v5e:2x2
jax: 0.10.0
libtpu: 0.0.40
codegen_flags: <defaults>
</compile_context>

<pallas_src>
import functools

import jax
import jax.numpy as jnp
from jax.experimental import pallas as pl
from jax.experimental.pallas import tpu as pltpu


def _log_entropy_loss_kernel(logits_ref, mask_ref, out_ref, acc_ref, *, inv_count):
    n = pl.program_id(0)
    t = pl.program_id(1)
    is_first = jnp.logical_and(n == 0, t == 0)
    is_last = jnp.logical_and(
        n == pl.num_programs(0) - 1, t == pl.num_programs(1) - 1
    )

    @pl.when(is_first)
    def _():
        acc_ref[...] = jnp.zeros_like(acc_ref)

    x = logits_ref[...].astype(jnp.float32)            # (1, C, T)
    m = jnp.max(x, axis=1, keepdims=True)              # (1, 1, T)
    e = jnp.exp(x - m)                                 # exactly one exp / element
    denom = jnp.sum(e, axis=1)                         # (1, T)  sum_c exp(x - m)
    keep = mask_ref[...] != 0                          # target.bool()
    num = jnp.sum(jnp.where(keep, e, 0.0), axis=1)     # (1, T)  masked sum
    # -log(num / denom) = log(denom) - log(num); num == 0 -> +inf (torch semantics)
    acc_ref[...] += jnp.log(denom) - jnp.log(num)

    @pl.when(is_last)
    def _():
        out_ref[0, 0] = jnp.sum(acc_ref[...]) * inv_count


def _pick_hw_tile(hw, c, itemsize=4, max_block_bytes=2 * 1024 * 1024):
    """Largest power-of-two multiple of 128 that divides hw and keeps one
    (1, C, tile) input block under max_block_bytes; else fall back to full hw."""
    best = None
    cand = 128
    while cand <= hw and cand <= 4096:
        if hw % cand == 0 and c * cand * itemsize <= max_block_bytes:
            best = cand
        cand *= 2
    return best if best is not None else hw


def log_entropy_loss(logits, target):
    """logits, target: (N, C, H, W). Returns scalar float32 loss
    == mean over (n,h,w) of -log( sum_c softmax(logits)[n,c,h,w] * (target!=0) )."""
    N, C, H, W = logits.shape
    HW = H * W
    logits3 = logits.reshape(N, C, HW)   # no dtype cast: kernel upcasts on load
    mask3 = target.reshape(N, C, HW)     # no dtype cast: kernel compares != 0

    hw_tile = _pick_hw_tile(HW, C)
    num_tiles = HW // hw_tile
    inv_count = 1.0 / float(N * HW)

    kernel = functools.partial(_log_entropy_loss_kernel, inv_count=inv_count)

    out = pl.pallas_call(
        kernel,
        out_shape=jax.ShapeDtypeStruct((1, 1), jnp.float32),
        grid=(N, num_tiles),
        in_specs=[
            pl.BlockSpec((1, C, hw_tile), lambda n, t: (n, 0, t)),
            pl.BlockSpec((1, C, hw_tile), lambda n, t: (n, 0, t)),
        ],
        out_specs=pl.BlockSpec(memory_space=pltpu.MemorySpace.SMEM),
        scratch_shapes=[pltpu.VMEM((1, hw_tile), jnp.float32)],
        compiler_params=pltpu.CompilerParams(
            dimension_semantics=("arbitrary", "arbitrary"),
            vmem_limit_bytes=32 * 1024 * 1024,
        ),
    )(logits3, mask3)
    return out[0, 0]


if __name__ == "__main__":
    key = jax.random.PRNGKey(0)
    k1, k2 = jax.random.split(key)
    N, C, H, W = 2, 4, 16, 16

    logits = jax.random.normal(k1, (N, C, H, W), dtype=jnp.float32)
    # Random 0/1 target; force channel 0 on so every (n,h,w) has at least one
    # active channel (otherwise log(0) = -inf, exactly as in the torch module).
    target = (jax.random.uniform(k2, (N, C, H, W)) > 0.5).astype(jnp.float32)
    target = target.at[:, 0].set(1.0)

    loss = log_entropy_loss(logits, target)
    jax.block_until_ready(loss)

    # pure-JAX reference check of the exact torch semantics
    p_ref = jax.nn.softmax(logits, axis=1)
    p_ref = jnp.where(target != 0, p_ref, 0.0)
    ref = jnp.mean(-jnp.log(jnp.sum(p_ref, axis=1)))
    assert jnp.allclose(loss, ref, atol=1e-5, rtol=1e-5), (loss, ref)

    print("KERNEL_OK")
</pallas_src>

<mosaic_0001>
module attributes {stable_mosaic.version = 11 : i64} {
  func.func @_log_entropy_loss_kernel(%arg0: i32, %arg1: i32, %arg2: memref<1x4x256xf32, #tpu.memory_space<vmem>>, %arg3: memref<1x4x256xf32, #tpu.memory_space<vmem>>, %arg4: memref<1x1xf32, #tpu.memory_space<smem>>, %arg5: memref<1x256xf32, #tpu.memory_space<vmem>>) attributes {dimension_semantics = [#tpu.dimension_semantics<arbitrary>, #tpu.dimension_semantics<arbitrary>], iteration_bounds = array<i64: 2, 1>, scalar_prefetch = 0 : i64, scratch_operands = 1 : i64, tpu.core_type = #tpu.core_type<tc>, window_params = [{transform_indices = @transform_0, window_bounds = array<i64: 1, 4, 256>}, {transform_indices = @transform_1, window_bounds = array<i64: 1, 4, 256>}, {transform_indices = @transform_2, window_bounds = array<i64: 1, 1>}]} {
    %c0_i32 = arith.constant 0 : i32
    %0 = arith.cmpi eq, %arg0, %c0_i32 : i32
    %c0_i32_0 = arith.constant 0 : i32
    %1 = arith.cmpi eq, %arg1, %c0_i32_0 : i32
    %2 = arith.andi %0, %1 : i1
    %c1_i32 = arith.constant 1 : i32
    %3 = arith.cmpi eq, %arg0, %c1_i32 : i32
    %c0_i32_1 = arith.constant 0 : i32
    %4 = arith.cmpi eq, %arg1, %c0_i32_1 : i32
    %5 = arith.andi %3, %4 : i1
    %6 = arith.extui %2 : i1 to i32
    %c0_i32_2 = arith.constant 0 : i32
    %7 = arith.cmpi ne, %6, %c0_i32_2 : i32
    scf.if %7 {
      %cst_17 = arith.constant 0.000000e+00 : f32
      %29 = vector.broadcast %cst_17 : f32 to vector<1x256xf32>
      %c0_18 = arith.constant 0 : index
      %c0_19 = arith.constant 0 : index
      %30 = vector.load %arg5[%c0_18, %c0_19] : memref<1x256xf32, #tpu.memory_space<vmem>>, vector<1x256xf32>
      tpu.vector_store %arg5[%c0_18, %c0_19], %29 {strides = array<i32>} : memref<1x256xf32, #tpu.memory_space<vmem>>, vector<1x256xf32>,
    } else {
    }
    %c0 = arith.constant 0 : index
    %c0_3 = arith.constant 0 : index
    %c0_4 = arith.constant 0 : index
    %8 = vector.load %arg2[%c0, %c0_3, %c0_4] : memref<1x4x256xf32, #tpu.memory_space<vmem>>, vector<1x4x256xf32>
    %cst = arith.constant dense<0xFF800000> : vector<1x256xf32>
    %9 = vector.multi_reduction <maximumf>, %8, %cst [1] : vector<1x4x256xf32> to vector<1x256xf32>
    %10 = vector.shape_cast %9 : vector<1x256xf32> to vector<1x1x256xf32>
    %11 = vector.broadcast %10 : vector<1x1x256xf32> to vector<1x4x256xf32>
    %12 = arith.subf %8, %11 : vector<1x4x256xf32>
    %13 = math.exp %12 : vector<1x4x256xf32>
    %cst_5 = arith.constant dense<0.000000e+00> : vector<1x256xf32>
    %14 = vector.multi_reduction <add>, %13, %cst_5 [1] : vector<1x4x256xf32> to vector<1x256xf32>
    %c0_6 = arith.constant 0 : index
    %c0_7 = arith.constant 0 : index
    %c0_8 = arith.constant 0 : index
    %15 = vector.load %arg3[%c0_6, %c0_7, %c0_8] : memref<1x4x256xf32, #tpu.memory_space<vmem>>, vector<1x4x256xf32>
    %cst_9 = arith.constant 0.000000e+00 : f32
    %16 = vector.broadcast %cst_9 : f32 to vector<1x4x256xf32>
    %17 = arith.cmpf one, %15, %16 : vector<1x4x256xf32>
    %cst_10 = arith.constant 0.000000e+00 : f32
    %18 = vector.broadcast %cst_10 : f32 to vector<1x4x256xf32>
    %19 = arith.select %17, %13, %18 : vector<1x4x256xi1>, vector<1x4x256xf32>
    %cst_11 = arith.constant dense<0.000000e+00> : vector<1x256xf32>
    %20 = vector.multi_reduction <add>, %19, %cst_11 [1] : vector<1x4x256xf32> to vector<1x256xf32>
    %c0_12 = arith.constant 0 : index
    %c0_13 = arith.constant 0 : index
    %21 = vector.load %arg5[%c0_12, %c0_13] : memref<1x256xf32, #tpu.memory_space<vmem>>, vector<1x256xf32>
    %22 = math.log %14 : vector<1x256xf32>
    %23 = math.log %20 : vector<1x256xf32>
    %24 = arith.subf %22, %23 : vector<1x256xf32>
    %25 = arith.addf %21, %24 : vector<1x256xf32>
    %c0_14 = arith.constant 0 : index
    %c0_15 = arith.constant 0 : index
    %26 = vector.load %arg5[%c0_14, %c0_15] : memref<1x256xf32, #tpu.memory_space<vmem>>, vector<1x256xf32>
    tpu.vector_store %arg5[%c0_14, %c0_15], %25 {strides = array<i32>} : memref<1x256xf32, #tpu.memory_space<vmem>>, vector<1x256xf32>,
    %27 = arith.extui %5 : i1 to i32
    %c0_i32_16 = arith.constant 0 : i32
    %28 = arith.cmpi ne, %27, %c0_i32_16 : i32
    scf.if %28 {
      %c0_17 = arith.constant 0 : index
      %c0_18 = arith.constant 0 : index
      %29 = vector.load %arg5[%c0_17, %c0_18] : memref<1x256xf32, #tpu.memory_space<vmem>>, vector<1x256xf32>
      %30 = vector.shape_cast %29 : vector<1x256xf32> to vector<1x1x256xf32>
      %cst_19 = arith.constant dense<0.000000e+00> : vector<1xf32>
      %31 = vector.multi_reduction <add>, %30, %cst_19 [1, 2] : vector<1x1x256xf32> to vector<1xf32>
      %32 = vector.shape_cast %31 : vector<1xf32> to vector<1x1x1xf32>
      %33 = vector.extract %32[0, 0, 0] : f32 from vector<1x1x1xf32>
      %cst_20 = arith.constant 0.001953125 : f32
      %34 = arith.mulf %33, %cst_20 : f32
      %c0_21 = arith.constant 0 : index
      %c0_22 = arith.constant 0 : index
      %35 = memref.load %arg4[%c0_21, %c0_22] : memref<1x1xf32, #tpu.memory_space<smem>>
      memref.store %34, %arg4[%c0_21, %c0_22] : memref<1x1xf32, #tpu.memory_space<smem>>
    } else {
    }
    return
  }
  func.func @transform_0(%arg0: i32, %arg1: i32) -> (i32, i32, i32) {
    %c0_i32 = arith.constant 0 : i32
    %c0_i32_0 = arith.constant 0 : i32
    return %arg0, %c0_i32, %arg1 : i32, i32, i32
  }
  func.func @transform_1(%arg0: i32, %arg1: i32) -> (i32, i32, i32) {
    %c0_i32 = arith.constant 0 : i32
    %c0_i32_0 = arith.constant 0 : i32
    return %arg0, %c0_i32, %arg1 : i32, i32, i32
  }
  func.func @transform_2(%arg0: i32, %arg1: i32) -> (i32, i32) {
    %c0_i32 = arith.constant 0 : i32
    %c0_i32_0 = arith.constant 0 : i32
    %c0_i32_1 = arith.constant 0 : i32
    return %c0_i32, %c0_i32_0 : i32, i32
  }
}

</mosaic_0001>

<llo_original>
// kernel: tpu_custom_call.1
$region0: #{tpu_custom_call.1}
  #allocation0 [shape = 'u32[]', space=smem, size = 0x4, offset = 0x4, fixed_abs, tag = 'smem constant byte address 0x4 - core index']
  #allocation1 [shape = 'u32[72,128]{1,0:T(1,128)}', space=vmem, size = 0x9000, scoped, tag = 'internal scratch']
  #allocation2 [shape = 'f32[1,256]{1,0:T(1,128)}', space=vmem, size = 0x400, scoped, tag = 'scratch operand']
  %s0 = inlined_call_operand.hbm [shape: f32[2,4,256], index: 0, kind: input, shape index: {}]
  %s1 = inlined_call_operand.hbm [shape: f32[2,4,256], index: 1, kind: input, shape index: {}]
  %s2 = inlined_call_operand.hbm [shape: f32[1,1], index: 2, kind: output, shape index: {}]
  %s3 = sld [smem:[#allocation0]]
  $region57: #{tpu_custom_call.1} parent=0
    _
  %s5 = ssub.s32 1, %s3
  %s6 = scalar_select 0, %s5, %s3
  $region1: #{tpu_custom_call.1} parent=0
    #allocation3 [shape = 'u8[8192]{0}', space=vmem, size = 0x2000, scoped, tag = 'input window, operand 0']
    #allocation4 [shape = 's32[2]{0}', space=sflag, size = 0x8, scoped, tag = 'scoped memory for tpu_custom_call.1']
    #allocation5 [shape = 's32[2]{0}', space=sflag, size = 0x8, scoped, tag = 'scoped memory for tpu_custom_call.1']
    #allocation6 [shape = 'u8[8192]{0}', space=vmem, size = 0x2000, scoped, tag = 'input window, operand 1']
    #allocation7 [shape = 's32[2]{0}', space=sflag, size = 0x8, scoped, tag = 'scoped memory for tpu_custom_call.1']
    #allocation8 [shape = 'u8[512]{0}', space=smem, size = 0x200, scoped, tag = 'output window, operand 0, single buffered']
    %7 = vsyncpa [#allocation4], 0
    %s8 = scalar_lea.sflag [#allocation4], 1
    %9 = vsyncpa %s8, 0
    %10 = vsyncpa [#allocation7], 0
    %s11 = scalar_lea.sflag [#allocation7], 1
    %12 = vsyncpa %s11, 0
    %13 = vsyncpa [#allocation5], 0
    loop: start=0, step=1, limit=4
    $region2: #{tpu_custom_call.1} parent=1 // loop_pre_header
      _
    $region3: #{tpu_custom_call.1} parent=1 // loop_header
      %s15 = sphi 0, %s19
      %p16 = scmp.ge.s32.totalorder %s15, 4
      %s22 = sphi 0, %s34
      %s23 = sphi 0, %s30
      %s24 = sphi 0, %s22
      %s25 = sphi 0, %s23
      %s26 = sphi 0, %s24
      %s27 = sphi 0, %s25
      %s39 = sphi 0, %s41
      %s42 = sphi 0, %s39
      %s43 = sphi 0, %s42
      %s59 = sphi 0, %s43
      %s67 = sphi 0, %s69
      %s70 = sphi 0, %s67
      %s71 = sphi 0, %s70
      %s87 = sphi 0, %s71
      %s91 = sphi 0, %s91
      %s93 = sphi 0, %s91
      %s94 = sphi 0, %s93
      %s108 = sphi 0, %s94
    $region4: #{tpu_custom_call.1} parent=1 // loop_header_branch
      %18 = sbr.rel (%p16) target = $region8
    $region5: #{tpu_custom_call.1} parent=1 // loop_body
      %s20 = ssub.s32 %s15, 1
      %s21 = ssub.s32 %s15, 2
      %s28 = sadd.s32 1, %s23
      %p29 = scmp.ge.s32.totalorder %s28, 1
      %s30 = scalar_select %p29, 0, %s28
      %s31 = sadd.s32 1, %s22
      %s32 = scalar_select %p29, %s31, %s22
      %p33 = scmp.ge.s32.totalorder %s32, 2
      %s34 = scalar_select %p33, 0, %s32
      %s35 = ssub.s32 %s22, %s34
      %s36 = ssub.s32 %s23, %s30
      %s37 = sor.u32 %s35, %s36
      %p38 = scmp.eq.s32.totalorder %s37, 0
      %s40 = sadd.s32 %s39, 1
      %s41 = scalar_select %p38, %s39, %s40
      %p44 = pneg %p38
      %p45 = scmp.eq.s32.totalorder %s15, 1
      %p46 = por %p44, %p45
      %p47 = scmp.ne.s32.totalorder %s39, %s42
      %p48 = scmp.eq.s32.totalorder %s15, 0
      %p49 = por %p47, %p48
      %p50 = scmp.ne.s32.totalorder %s39, %s42
      %p51 = scmp.eq.s32.totalorder %s20, 1
      %p52 = por %p50, %p51
      %p53 = scmp.ne.s32.totalorder %s42, %s43
      %p54 = scmp.eq.s32.totalorder %s20, 0
      %p55 = por %p53, %p54
      %p56 = scmp.ne.s32.totalorder %s42, %s43
      %p57 = scmp.eq.s32.totalorder %s21, 1
      %p58 = por %p56, %p57
      %p60 = scmp.ne.s32.totalorder %s43, %s59
      %p61 = scmp.eq.s32.totalorder %s21, 0
      %p62 = por %p60, %p61
      %s63 = ssub.s32 %s22, %s34
      %s64 = ssub.s32 %s23, %s30
      %s65 = sor.u32 %s63, %s64
      %p66 = scmp.eq.s32.totalorder %s65, 0
      %s68 = sadd.s32 %s67, 1
      %s69 = scalar_select %p66, %s67, %s68
      %p72 = pneg %p66
      %p73 = scmp.eq.s32.totalorder %s15, 1
      %p74 = por %p72, %p73
      %p75 = scmp.ne.s32.totalorder %s67, %s70
      %p76 = scmp.eq.s32.totalorder %s15, 0
      %p77 = por %p75, %p76
      %p78 = scmp.ne.s32.totalorder %s67, %s70
      %p79 = scmp.eq.s32.totalorder %s20, 1
      %p80 = por %p78, %p79
      %p81 = scmp.ne.s32.totalorder %s70, %s71
      %p82 = scmp.eq.s32.totalorder %s20, 0
      %p83 = por %p81, %p82
      %p84 = scmp.ne.s32.totalorder %s70, %s71
      %p85 = scmp.eq.s32.totalorder %s21, 1
      %p86 = por %p84, %p85
      %p88 = scmp.ne.s32.totalorder %s71, %s87
      %p89 = scmp.eq.s32.totalorder %s21, 0
      %p90 = por %p88, %p89
      %s92 = sadd.s32 %s91, 1
      %p95 = scmp.eq.s32.totalorder %s15, 1
      %p96 = scmp.ne.s32.totalorder %s91, %s93
      %p97 = scmp.eq.s32.totalorder %s15, 0
      %p98 = por %p96, %p97
      %p99 = scmp.ne.s32.totalorder %s91, %s93
      %p100 = scmp.eq.s32.totalorder %s20, 1
      %p101 = por %p99, %p100
      %p102 = scmp.ne.s32.totalorder %s93, %s94
      %p103 = scmp.eq.s32.totalorder %s20, 0
      %p104 = por %p102, %p103
      %p105 = scmp.ne.s32.totalorder %s93, %s94
      %p106 = scmp.eq.s32.totalorder %s21, 1
      %p107 = por %p105, %p106
      %p109 = scmp.ne.s32.totalorder %s94, %s108
      %p110 = scmp.eq.s32.totalorder %s21, 0
      %p111 = por %p109, %p110
      %p112 = scmp.le.s32.totalorder 1, %s15
      %p113 = scmp.lt.s32.totalorder %s15, 3
      %p114 = pnand %p112, %p113
      %p115 = pneg %p114
      // Predicated region
      $region9: #{tpu_custom_call.1} parent=5 // pred_check
        _
      $region10: #{tpu_custom_call.1} parent=5 // pred_check_branch
        %117 = sbr.rel (%p114) target = $region12
      $region11: #{tpu_custom_call.1} parent=5 // pred_region
        %s118 = ssub.s32 %s15, 1
      $region12: #{tpu_custom_call.1} parent=5 // pred_fallthru
        _
      %p119 = scmp.lt.s32.totalorder %s15, 2
      // Predicated region
      $region13: #{tpu_custom_call.1} parent=5 // pred_check
        %p120 = pneg %p119
      $region14: #{tpu_custom_call.1} parent=5 // pred_check_branch
        %122 = sbr.rel (%p120) target = $region16
      $region15: #{tpu_custom_call.1} parent=5 // pred_region
        // Predicated region
        $region17: #{tpu_custom_call.1} parent=15 // pred_check
          %p123 = pneg %p49
        $region18: #{tpu_custom_call.1} parent=15 // pred_check_branch
          %125 = sbr.rel (%p123) target = $region20
        $region19: #{tpu_custom_call.1} parent=15 // pred_region
          %s126 = sand.u32 %s39, 1
          %s127 = scalar_lea.sflag [#allocation4], %s126
          %s128 = sand.u32 %s39, 1
          %s129 = smul.addr %s128, 8
          %s130 = scalar_lea.vmem [#allocation3], %s129
          %s131 = smul.u32 2, %s23
          %133 = vsyncadd %s127, 0
          %s134 = smul.addr %s22, 2
          %s135 = sadd.s32 %s131, %s134
          %s136 = smul.addr %s135, 4
          %s137 = scalar_lea.hbm %s0, %s136
          %s139 = sshll.u32 %s137, 4
          %s140 = int_to_ptr.hbm [resolvable:$true] %s139
          %s141 = sshll.u32 %s130, 4
          %s142 = int_to_ptr.vmem [resolvable:$true] %s141
          %144 = dma.hbm_to_vmem [thread:$0]  %s140, 128, %s142, %s127
        $region20: #{tpu_custom_call.1} parent=15 // pred_fallthru
          _
        // Predicated region
        $region21: #{tpu_custom_call.1} parent=15 // pred_check
          %p145 = pneg %p77
        $region22: #{tpu_custom_call.1} parent=15 // pred_check_branch
          %147 = sbr.rel (%p145) target = $region24
        $region23: #{tpu_custom_call.1} parent=15 // pred_region
          %s148 = sand.u32 %s67, 1
          %s149 = scalar_lea.sflag [#allocation7], %s148
          %s150 = sand.u32 %s67, 1
          %s151 = smul.addr %s150, 8
          %s152 = scalar_lea.vmem [#allocation6], %s151
          %s153 = smul.u32 2, %s23
          %155 = vsyncadd %s149, 0
          %s156 = smul.addr %s22, 2
          %s157 = sadd.s32 %s153, %s156
          %s158 = smul.addr %s157, 4
          %s159 = scalar_lea.hbm %s1, %s158
          %s161 = sshll.u32 %s159, 4
          %s162 = int_to_ptr.hbm [resolvable:$true] %s161
          %s163 = sshll.u32 %s152, 4
          %s164 = int_to_ptr.vmem [resolvable:$true] %s163
          %166 = dma.hbm_to_vmem [thread:$0]  %s162, 128, %s164, %s149
        $region24: #{tpu_custom_call.1} parent=15 // pred_fallthru
          _
      $region16: #{tpu_custom_call.1} parent=5 // pred_fallthru
        _
      %p167 = scmp.le.s32.totalorder 1, %s15
      %p168 = scmp.lt.s32.totalorder %s15, 3
      %p169 = pnand %p167, %p168
      %p170 = pneg %p169
      // Predicated region
      $region25: #{tpu_custom_call.1} parent=5 // pred_check
        _
      $region26: #{tpu_custom_call.1} parent=5 // pred_check_branch
        %172 = sbr.rel (%p169) target = $region28
      $region27: #{tpu_custom_call.1} parent=5 // pred_region
        %s173 = ssub.s32 %s15, 1
        %s174 = sand.u32 %s42, 1
        %s175 = scalar_lea.sflag [#allocation4], %s174
        %s176 = sand.u32 %s42, 1
        %s177 = smul.addr %s176, 8
        %s178 = scalar_lea.vmem [#allocation3], %s177
        // Predicated region
        $region29: #{tpu_custom_call.1} parent=27 // pred_check
          %p179 = pneg %p55
        $region30: #{tpu_custom_call.1} parent=27 // pred_check_branch
          %181 = sbr.rel (%p179) target = $region32
        $region31: #{tpu_custom_call.1} parent=27 // pred_region
          %183 = dma.done %s175, 128
        $region32: #{tpu_custom_call.1} parent=27 // pred_fallthru
          _
        %s184 = sand.u32 %s70, 1
        %s185 = scalar_lea.sflag [#allocation7], %s184
        %s186 = sand.u32 %s70, 1
        %s187 = smul.addr %s186, 8
        %s188 = scalar_lea.vmem [#allocation6], %s187
        // Predicated region
        $region33: #{tpu_custom_call.1} parent=27 // pred_check
          %p189 = pneg %p83
        $region34: #{tpu_custom_call.1} parent=27 // pred_check_branch
          %191 = sbr.rel (%p189) target = $region36
        $region35: #{tpu_custom_call.1} parent=27 // pred_region
          %193 = dma.done %s185, 128
        $region36: #{tpu_custom_call.1} parent=27 // pred_fallthru
          _
        %s194 = sand.u32 %s42, 1
        %s195 = scalar_lea.sflag [#allocation4], %s194
        %s196 = sand.u32 %s42, 1
        %s197 = smul.addr %s196, 8
        %s198 = scalar_lea.vmem [#allocation3], %s197
        %p199 = pneg %p55
        %p200 = pneg %p52
        %s201 = sand.u32 %s70, 1
        %s202 = scalar_lea.sflag [#allocation7], %s201
        %s203 = sand.u32 %s70, 1
        %s204 = smul.addr %s203, 8
        %s205 = scalar_lea.vmem [#allocation6], %s204
        %p206 = pneg %p83
        %p207 = pneg %p80
        %p208 = pneg %p104
        %p209 = pneg %p101
        %s210 = smul.u32 2, %s25
        %s211 = smul.u32 2, %s25
        %p212 = scmp.eq.s32.totalorder %s24, 0
        %p213 = scmp.eq.s32.totalorder %s25, 0
        %p214 = pnand %p212, %p213
        %p215 = pneg %p214
        %p216 = scmp.eq.s32.totalorder %s24, 1
        %p217 = pnand %p216, %p213
        %p218 = pneg %p217
        // Predicated region
        $region37: #{tpu_custom_call.1} parent=27 // pred_check
          _
        $region38: #{tpu_custom_call.1} parent=27 // pred_check_branch
          %220 = sbr.rel (%p214) target = $region40
        $region39: #{tpu_custom_call.1} parent=27 // pred_region
          %v221 = vlaneseq
          %vm222 = vcmp.ge.s32.totalorder %v221, 0
          %vm223 = vcmp.lt.s32.totalorder %v221, 256
          %vm224 = vmand %vm222, %vm223
          %225 = vst.msk [vmem:[#allocation2] sm:$0x3] %vm224, 0.0
        $region40: #{tpu_custom_call.1} parent=27 // pred_fallthru
          _
        %v226 = vld [vmem:[%s178] sm:$0xff]
        %228 = vst [vmem:[#allocation1] ss:$2 sm:$0xff] %v226
        %v229 = vld.sshfl [vmem:[#allocation1] sm:$0xff pattern:$0x75316420]
        %v230 = vld.sshfl [vmem:[#allocation1 + $0x8] sm:$0xff pattern:$0x75316420]
        %vm233 = vcmask 1043456
        %v234 = vsel %vm233, %v229, -inf
        %v235 = vrot.slane %v234, 4
        %v236 = vmax.f32 %v234, %v235
        %v237 = vrot.slane %v236, 2
        %v238 = vmax.f32 %v236, %v237
        %v239 = vrot.slane %v238, 1
        %v240 = vmax.f32 %v238, %v239
        %v241 = vsel %vm233, %v230, -inf
        %v242 = vrot.slane %v241, 4
        %v243 = vmax.f32 %v241, %v242
        %v244 = vrot.slane %v243, 2
        %v245 = vmax.f32 %v243, %v244
        %v246 = vrot.slane %v245, 1
        %v247 = vmax.f32 %v245, %v246
        %v250 = vrot.slane %v247, 4
        %v251 = vsel %vm233, %v240, %v250
        %v253 = vsub.f32 %v226, %v251
        %v254 = vmul.f32 %v253, 1.442695
        %v255 = vpow.pop %v254
        %257 = vst [vmem:[#allocation1] ss:$2 sm:$0xff] %v255
        %v258 = vld.sshfl [vmem:[#allocation1] sm:$0xff pattern:$0x75316420]
        %v259 = vld.sshfl [vmem:[#allocation1 + $0x8] sm:$0xff pattern:$0x75316420]
        %v262 = vsel %vm233, %v258, 0.0
        %v263 = vrot.slane %v262, 4
        %v264 = vadd.f32 %v262, %v263
        %v265 = vrot.slane %v264, 2
        %v266 = vadd.f32 %v264, %v265
        %v267 = vrot.slane %v266, 1
        %v268 = vadd.f32 %v266, %v267
        %v269 = vsel %vm233, %v259, 0.0
        %v270 = vrot.slane %v269, 4
        %v271 = vadd.f32 %v269, %v270
        %v272 = vrot.slane %v271, 2
        %v273 = vadd.f32 %v271, %v272
        %v274 = vrot.slane %v273, 1
        %v275 = vadd.f32 %v273, %v274
        %v276 = vld [vmem:[%s188] sm:$0xff]
        %vm277 = vcmp.ne.f32.partialorder %v276, 0.0
        %v278 = vsel %vm277, %v255, 0.0
        %280 = vst [vmem:[#allocation1] ss:$2 sm:$0xff] %v278
        %v281 = vld.sshfl [vmem:[#allocation1] sm:$0xff pattern:$0x75316420]
        %v282 = vld.sshfl [vmem:[#allocation1 + $0x8] sm:$0xff pattern:$0x75316420]
        %v285 = vsel %vm233, %v281, 0.0
        %v286 = vrot.slane %v285, 4
        %v287 = vadd.f32 %v285, %v286
        %v288 = vrot.slane %v287, 2
        %v289 = vadd.f32 %v287, %v288
        %v290 = vrot.slane %v289, 1
        %v291 = vadd.f32 %v289, %v290
        %v292 = vsel %vm233, %v282, 0.0
        %v293 = vrot.slane %v292, 4
        %v294 = vadd.f32 %v292, %v293
        %v295 = vrot.slane %v294, 2
        %v296 = vadd.f32 %v294, %v295
        %v297 = vrot.slane %v296, 1
        %v298 = vadd.f32 %v296, %v297
        %v299 = vld [vmem:[#allocation2] sm:$0x3]
        %v300 = vlog2.pop %v268
        %v301 = vmul.f32 %v300, 0.6931472
        %v302 = vlog2.pop %v275
        %v303 = vmul.f32 %v302, 0.6931472
        %v304 = vlog2.pop %v291
        %v305 = vmul.f32 %v304, 0.6931472
        %v306 = vlog2.pop %v298
        %v307 = vmul.f32 %v306, 0.6931472
        %v308 = vsub.f32 %v301, %v305
        %v309 = vsub.f32 %v303, %v307
        %v312 = vrot.slane %v309, 7
        %vm313 = vcmask 1040384
        %v314 = vsel %vm313, %v308, %v312
        %v316 = vadd.f32 %v299, %v314
        %v317 = vlaneseq
        %vm318 = vcmp.ge.s32.totalorder %v317, 0
        %vm319 = vcmp.lt.s32.totalorder %v317, 256
        %vm320 = vmand %vm318, %vm319
        %321 = vst.msk [vmem:[#allocation2] sm:$0x3] %vm320, %v316
        // Predicated region
        $region41: #{tpu_custom_call.1} parent=27 // pred_check
          _
        $region42: #{tpu_custom_call.1} parent=27 // pred_check_branch
          %323 = sbr.rel (%p217) target = $region44
        $region43: #{tpu_custom_call.1} parent=27 // pred_region
          %v324 = vld [vmem:[#allocation2] sm:$0x3]
          %v326 = vperm.slane %v324, 0
          %v327 = vperm.slane %v324, 1
          %v330 = vsel %vm313, %v326, 0.0
          %v331 = vsel %vm313, %v327, 0.0
          %v332 = vadd.f32 %v330, %v331
          %333 = vadd.xlane.f32.xlu0 %v332
          %v334 = vpop.xlane.xlu0 %333
          %v335 = vrot.slane %v334, 4
          %v336 = vadd.f32 %v334, %v335
          %v337 = vrot.slane %v336, 2
          %v338 = vadd.f32 %v336, %v337
          %v339 = vrot.slane %v338, 1
          %v340 = vadd.f32 %v338, %v339
          %s341 = vtos %v340
          %s342 = smul.f32 %s341, 0.001953125
          %s343 = scalar_lea.smem [#allocation8], 0
          %344 = sst [smem:[%s343]] %s342
        $region44: #{tpu_custom_call.1} parent=27 // pred_fallthru
          _
        // Predicated region
        $region45: #{tpu_custom_call.1} parent=27 // pred_check
          %p345 = pneg %p101
        $region46: #{tpu_custom_call.1} parent=27 // pred_check_branch
          %347 = sbr.rel (%p345) target = $region48
        $region47: #{tpu_custom_call.1} parent=27 // pred_region
          %349 = vsyncadd [#allocation5], 0
          %s351 = sshll.u32 %s2, 4
          %s352 = int_to_ptr.hbm [resolvable:$true] %s351
          %354 = dma.smem_to_hbm [#allocation8], 16, %s352, [#allocation5]
        $region48: #{tpu_custom_call.1} parent=27 // pred_fallthru
          _
        // Predicated region
        $region49: #{tpu_custom_call.1} parent=27 // pred_check
          %p355 = pneg %p101
        $region50: #{tpu_custom_call.1} parent=27 // pred_check_branch
          %357 = sbr.rel (%p355) target = $region52
        $region51: #{tpu_custom_call.1} parent=27 // pred_region
          %359 = dma.done [#allocation5], 16
        $region52: #{tpu_custom_call.1} parent=27 // pred_fallthru
          _
        %360 = sfence
      $region28: #{tpu_custom_call.1} parent=5 // pred_fallthru
        _
      %p361 = scmp.le.s32.totalorder 2, %s15
      // Predicated region
      $region53: #{tpu_custom_call.1} parent=5 // pred_check
        %p362 = pneg %p361
      $region54: #{tpu_custom_call.1} parent=5 // pred_check_branch
        %364 = sbr.rel (%p362) target = $region56
      $region55: #{tpu_custom_call.1} parent=5 // pred_region
        %s365 = ssub.s32 %s15, 2
      $region56: #{tpu_custom_call.1} parent=5 // pred_fallthru
        _
    $region6: #{tpu_custom_call.1} parent=1 // loop_footer
      %s19 = sadd.s32 1, %s15
    $region7: #{tpu_custom_call.1} parent=1 // loop_footer_branch
      %14 = sbr.rel target = $region3
    $region8: #{tpu_custom_call.1} parent=1 // loop_exit
      _
    %366 = vsyncpa [#allocation4], 1
    %s367 = scalar_lea.sflag [#allocation4], 1
    %368 = vsyncpa %s367, 1
    %369 = vsyncpa [#allocation7], 1
    %s370 = scalar_lea.sflag [#allocation7], 1
    %371 = vsyncpa %s370, 1
    %372 = vsyncpa [#allocation5], 1
    %s373 = scalar_lea.sflag [#allocation5], 1
    %374 = vsyncpa %s373, 1

</llo_original>
